<compile_context>
chip_gen: v5e
topology: v5e:2x2
jax: 0.10.0
libtpu: 0.0.40
codegen_flags: <defaults>
</compile_context>

<pallas_src>
import math

import jax
import jax.numpy as jnp
from jax.experimental import pallas as pl
from jax.experimental.pallas import tpu as pltpu


EPS = 1e-12          # LayerNormalisation eps (added to std, torch-style)
ROW_BLOCK = 2048     # default rows per grid step (1 MiB/block at D=128)


# --------------------------------- kernel ------------------------------------
def layernorm_kernel(x_ref, alpha_ref, bias_ref, o_ref):
    x = x_ref[...]                     # (row_block, D) f32
    alpha = alpha_ref[...]             # (1, D) -- loaded once per step
    bias = bias_ref[...]               # (1, D)

    n = x.shape[-1]
    inv_nm1 = 1.0 / (n - 1)            # unbiased variance (torch std default)

    mean = jnp.mean(x, axis=-1, keepdims=True)             # XLU cross-lane reduce
    centered = x - mean
    var = jnp.sum(centered * centered, axis=-1, keepdims=True) * inv_nm1
    std = jnp.sqrt(var)

    # Exact reciprocal: mem-bound kernel, EUP/VALU have huge slack, so
    # exactness is free and keeps bit-level parity with the torch module.
    inv = 1.0 / (std + EPS)

    # Recompute (x - mean) on the store path instead of reusing `centered`
    # so no full-block temporary has to stay live (avoids VMEM spills at
    # large row blocks).
    o_ref[...] = alpha * ((x - mean) * inv) + bias


# --------------------------------- wrapper ------------------------------------
def layer_normalisation(x, alpha, bias, *, row_block=None):
    """x: (..., D) float32; alpha, bias: (D,) float32."""
    d = x.shape[-1]
    lead = x.shape[:-1]
    rows = math.prod(lead) if lead else 1

    if row_block is None:
        # Collapse tiny inputs to a single grid step; cap big inputs at a
        # block large enough to amortize per-step overhead but small enough
        # for every generation's VMEM (4 MiB double-buffered x+out at D=128).
        row_block = min(rows, ROW_BLOCK)
    # Sublane-align the row block.
    row_block = max(8, ((row_block + 7) // 8) * 8)

    num_blocks = pl.cdiv(rows, row_block)
    rows_padded = num_blocks * row_block

    x2 = x.reshape(rows, d)            # rows on sublanes, features on lanes
    if rows_padded != rows:
        x2 = jnp.pad(x2, ((0, rows_padded - rows), (0, 0)))
    a2 = alpha.reshape(1, d)
    b2 = bias.reshape(1, d)

    out = pl.pallas_call(
        layernorm_kernel,
        out_shape=jax.ShapeDtypeStruct((rows_padded, d), x.dtype),
        grid_spec=pltpu.PrefetchScalarGridSpec(
            num_scalar_prefetch=0,
            grid=(num_blocks,),
            in_specs=[
                pl.BlockSpec((row_block, d), lambda i: (i, 0)),   # x rows
                pl.BlockSpec((1, d), lambda i: (0, 0)),           # alpha
                pl.BlockSpec((1, d), lambda i: (0, 0)),           # bias
            ],
            out_specs=pl.BlockSpec((row_block, d), lambda i: (i, 0)),
        ),
        compiler_params=pltpu.CompilerParams(
            dimension_semantics=("parallel",)),
    )(x2, a2, b2)

    if rows_padded != rows:
        out = out[:rows]
    return out.reshape(*lead, d)


# --------------------------- pure-JAX reference --------------------------------
def layer_normalisation_ref(x, alpha, bias):
    n = x.shape[-1]
    mean = jnp.mean(x, axis=-1, keepdims=True)
    var = jnp.sum((x - mean) ** 2, axis=-1, keepdims=True) / (n - 1)
    std = jnp.sqrt(var)
    return alpha * (x - mean) / (std + EPS) + bias


# ----------------------------------- main --------------------------------------
if __name__ == "__main__":
    key = jax.random.PRNGKey(0)
    kx, ka, kb = jax.random.split(key, 3)

    B, S, D = 2, 8, 128                 # small shapes; D = 128 -> lane-dense
    x = jax.random.normal(kx, (B, S, D), jnp.float32)
    alpha = 1.0 + 0.1 * jax.random.normal(ka, (D,), jnp.float32)
    bias = 0.1 * jax.random.normal(kb, (D,), jnp.float32)

    out = layer_normalisation(x, alpha, bias)
    out = jax.block_until_ready(out)

    ref = layer_normalisation_ref(x, alpha, bias)
    assert out.shape == (B, S, D)
    # Exact arithmetic in-kernel -> tight f32 tolerance.
    assert jnp.allclose(out, ref, atol=1e-5, rtol=1e-5), \
        f"max abs err {jnp.max(jnp.abs(out - ref))}"

    print("KERNEL_OK")
</pallas_src>

<mosaic_0001>
module attributes {stable_mosaic.version = 11 : i64} {
  func.func @layernorm_kernel(%arg0: i32, %arg1: memref<16x128xf32, #tpu.memory_space<vmem>>, %arg2: memref<1x128xf32, #tpu.memory_space<vmem>>, %arg3: memref<1x128xf32, #tpu.memory_space<vmem>>, %arg4: memref<16x128xf32, #tpu.memory_space<vmem>>) attributes {dimension_semantics = [#tpu.dimension_semantics<parallel>], iteration_bounds = array<i64: 1>, scalar_prefetch = 0 : i64, scratch_operands = 0 : i64, tpu.core_type = #tpu.core_type<tc>, window_params = [{transform_indices = @transform_0, window_bounds = array<i64: 16, 128>}, {pipeline_mode = #tpu.pipeline_mode<synchronous>, transform_indices = @transform_1, window_bounds = array<i64: 1, 128>}, {pipeline_mode = #tpu.pipeline_mode<synchronous>, transform_indices = @transform_2, window_bounds = array<i64: 1, 128>}, {transform_indices = @transform_3, window_bounds = array<i64: 16, 128>}]} {
    %c0 = arith.constant 0 : index
    %c0_0 = arith.constant 0 : index
    %0 = vector.load %arg1[%c0, %c0_0] : memref<16x128xf32, #tpu.memory_space<vmem>>, vector<16x128xf32>
    %c0_1 = arith.constant 0 : index
    %c0_2 = arith.constant 0 : index
    %1 = vector.load %arg2[%c0_1, %c0_2] : memref<1x128xf32, #tpu.memory_space<vmem>>, vector<1x128xf32>
    %c0_3 = arith.constant 0 : index
    %c0_4 = arith.constant 0 : index
    %2 = vector.load %arg3[%c0_3, %c0_4] : memref<1x128xf32, #tpu.memory_space<vmem>>, vector<1x128xf32>
    %cst = arith.constant dense<0.000000e+00> : vector<16xf32>
    %3 = vector.multi_reduction <add>, %0, %cst [1] : vector<16x128xf32> to vector<16xf32>
    %4 = vector.shape_cast %3 : vector<16xf32> to vector<16x1xf32>
    %cst_5 = arith.constant 1.280000e+02 : f32
    %5 = vector.broadcast %cst_5 : f32 to vector<16x1xf32>
    %6 = arith.divf %4, %5 : vector<16x1xf32>
    %7 = vector.broadcast %6 : vector<16x1xf32> to vector<16x128xf32>
    %8 = arith.subf %0, %7 : vector<16x128xf32>
    %9 = arith.mulf %8, %8 : vector<16x128xf32>
    %cst_6 = arith.constant dense<0.000000e+00> : vector<16xf32>
    %10 = vector.multi_reduction <add>, %9, %cst_6 [1] : vector<16x128xf32> to vector<16xf32>
    %11 = vector.shape_cast %10 : vector<16xf32> to vector<16x1xf32>
    %cst_7 = arith.constant 0.00787401571 : f32
    %12 = vector.broadcast %cst_7 : f32 to vector<16x1xf32>
    %13 = arith.mulf %11, %12 : vector<16x1xf32>
    %14 = math.sqrt %13 : vector<16x1xf32>
    %cst_8 = arith.constant 9.99999996E-13 : f32
    %15 = vector.broadcast %cst_8 : f32 to vector<16x1xf32>
    %16 = arith.addf %14, %15 : vector<16x1xf32>
    %cst_9 = arith.constant 1.000000e+00 : f32
    %17 = vector.broadcast %cst_9 : f32 to vector<16x1xf32>
    %18 = arith.divf %17, %16 : vector<16x1xf32>
    %19 = vector.broadcast %6 : vector<16x1xf32> to vector<16x128xf32>
    %20 = arith.subf %0, %19 : vector<16x128xf32>
    %21 = vector.broadcast %18 : vector<16x1xf32> to vector<16x128xf32>
    %22 = arith.mulf %20, %21 : vector<16x128xf32>
    %23 = vector.broadcast %1 : vector<1x128xf32> to vector<16x128xf32>
    %24 = arith.mulf %23, %22 : vector<16x128xf32>
    %25 = vector.broadcast %2 : vector<1x128xf32> to vector<16x128xf32>
    %26 = arith.addf %24, %25 : vector<16x128xf32>
    %c0_10 = arith.constant 0 : index
    %c0_11 = arith.constant 0 : index
    %27 = vector.load %arg4[%c0_10, %c0_11] : memref<16x128xf32, #tpu.memory_space<vmem>>, vector<16x128xf32>
    tpu.vector_store %arg4[%c0_10, %c0_11], %26 {strides = array<i32>} : memref<16x128xf32, #tpu.memory_space<vmem>>, vector<16x128xf32>,
    return
  }
  func.func @transform_0(%arg0: i32) -> (i32, i32) {
    %c0_i32 = arith.constant 0 : i32
    %c0_i32_0 = arith.constant 0 : i32
    return %arg0, %c0_i32 : i32, i32
  }
  func.func @transform_1(%arg0: i32) -> (i32, i32) {
    %c0_i32 = arith.constant 0 : i32
    %c0_i32_0 = arith.constant 0 : i32
    %c0_i32_1 = arith.constant 0 : i32
    return %c0_i32, %c0_i32_0 : i32, i32
  }
  func.func @transform_2(%arg0: i32) -> (i32, i32) {
    %c0_i32 = arith.constant 0 : i32
    %c0_i32_0 = arith.constant 0 : i32
    %c0_i32_1 = arith.constant 0 : i32
    return %c0_i32, %c0_i32_0 : i32, i32
  }
  func.func @transform_3(%arg0: i32) -> (i32, i32) {
    %c0_i32 = arith.constant 0 : i32
    %c0_i32_0 = arith.constant 0 : i32
    return %arg0, %c0_i32 : i32, i32
  }
}

</mosaic_0001>

<llo_original>
// kernel: tpu_custom_call.1
$region0: #{tpu_custom_call.1}
  #allocation0 [shape = 'u32[]', space=smem, size = 0x4, offset = 0x4, fixed_abs, tag = 'smem constant byte address 0x4 - core index']
  #allocation1 [shape = 'u32[72,128]{1,0:T(1,128)}', space=vmem, size = 0x9000, scoped, tag = 'internal scratch']
  %s0 = inlined_call_operand.hbm [shape: f32[16,128], index: 0, kind: input, shape index: {}]
  %s1 = inlined_call_operand.hbm [shape: f32[1,128], index: 1, kind: input, shape index: {}]
  %s2 = inlined_call_operand.vmem [shape: f32[1,128], index: 2, kind: input, shape index: {}]
  %s3 = inlined_call_operand.hbm [shape: f32[16,128], index: 3, kind: output, shape index: {}]
  %s4 = sld [smem:[#allocation0]]
  $region30: #{tpu_custom_call.1} parent=0
    _
  %s6 = ssub.s32 1, %s4
  %s7 = scalar_select 0, %s6, %s4
  $region1: #{tpu_custom_call.1} parent=0
    #allocation2 [shape = 'u8[8192]{0}', space=vmem, size = 0x2000, scoped, tag = 'input window, operand 0, single buffered']
    #allocation3 [shape = 's32[1]{0}', space=sflag, size = 0x4, scoped, tag = 'scoped memory for tpu_custom_call.1']
    #allocation4 [shape = 's32[1]{0}', space=sflag, size = 0x4, scoped, tag = 'scoped memory for tpu_custom_call.1']
    #allocation5 [shape = 'u8[512]{0}', space=vmem, size = 0x400, scoped, tag = 'input window, operand 1, single buffered']
    #allocation6 [shape = 's32[1]{0}', space=sflag, size = 0x4, scoped, tag = 'scoped memory for tpu_custom_call.1']
    #allocation7 [shape = 'u8[8192]{0}', space=vmem, size = 0x2000, scoped, tag = 'output window, operand 0, single buffered']
    %8 = vsyncpa [#allocation3], 0
    %9 = vsyncpa [#allocation6], 0
    %10 = vsyncpa [#allocation4], 0
    // Predicated region
    $region2: #{tpu_custom_call.1} parent=1 // pred_check
      _
    $region3: #{tpu_custom_call.1} parent=1 // pred_check_branch
      %12 = sbr.rel (0) target = $region5
    $region4: #{tpu_custom_call.1} parent=1 // pred_region
      %14 = vsyncadd [#allocation3], 0
      %s15 = sshll.u32 %s0, 4
      %s16 = int_to_ptr.hbm [resolvable:$true] %s15
      %s17 = sshll.u32 [#allocation2], 4
      %s18 = int_to_ptr.vmem [resolvable:$true] %s17
      %23 = dma.hbm_to_vmem [thread:$0]  %s16, 256, %s18, [#allocation3], 128, 128, 8
    $region5: #{tpu_custom_call.1} parent=1 // pred_fallthru
      _
    // Predicated region
    $region6: #{tpu_custom_call.1} parent=1 // pred_check
      _
    $region7: #{tpu_custom_call.1} parent=1 // pred_check_branch
      %25 = sbr.rel (0) target = $region9
    $region8: #{tpu_custom_call.1} parent=1 // pred_region
      %27 = vsyncadd [#allocation6], 0
      %s29 = sshll.u32 %s1, 4
      %s30 = int_to_ptr.hbm [resolvable:$true] %s29
      %s31 = sshll.u32 [#allocation5], 4
      %s32 = int_to_ptr.vmem [resolvable:$true] %s31
      %34 = dma.hbm_to_vmem [thread:$0]  %s30, 16, %s32, [#allocation6]
    $region9: #{tpu_custom_call.1} parent=1 // pred_fallthru
      _
    // Predicated region
    $region10: #{tpu_custom_call.1} parent=1 // pred_check
      _
    $region11: #{tpu_custom_call.1} parent=1 // pred_check_branch
      %36 = sbr.rel (0) target = $region13
    $region12: #{tpu_custom_call.1} parent=1 // pred_region
      _
    $region13: #{tpu_custom_call.1} parent=1 // pred_fallthru
      _
    // Predicated region
    $region14: #{tpu_custom_call.1} parent=1 // pred_check
      _
    $region15: #{tpu_custom_call.1} parent=1 // pred_check_branch
      %38 = sbr.rel (0) target = $region17
    $region16: #{tpu_custom_call.1} parent=1 // pred_region
      %40 = dma.done [#allocation3], 256
    $region17: #{tpu_custom_call.1} parent=1 // pred_fallthru
      _
    // Predicated region
    $region18: #{tpu_custom_call.1} parent=1 // pred_check
      _
    $region19: #{tpu_custom_call.1} parent=1 // pred_check_branch
      %42 = sbr.rel (0) target = $region21
    $region20: #{tpu_custom_call.1} parent=1 // pred_region
      %44 = dma.done [#allocation6], 16
    $region21: #{tpu_custom_call.1} parent=1 // pred_fallthru
      _
    %v45 = vld [vmem:[#allocation2] sm:$0xff]
    %v46 = vld [vmem:[#allocation2 + $0x8] sm:$0xff]
    %v47 = vld [vmem:[#allocation5] sm:$0x1]
    %v48 = vld [vmem:[%s2] sm:$0x1]
    %49 = vadd.xlane.f32.xlu0 %v45
    %v50 = vpop.xlane.xlu0 %49
    %51 = vadd.xlane.f32.xlu0 %v46
    %v52 = vpop.xlane.xlu0 %51
    %v53 = vrcp.pop 128.0
    %v54 = vmul.f32 128.0, %v53
    %v55 = vsub.f32 1.0, %v54
    %v56 = vmul.f32 %v53, %v55
    %v57 = vadd.f32 %v53, %v56
    %vm58 = vweird.f32 %v53
    %v59 = vsel %vm58, %v53, %v57
    %v60 = vmul.f32 %v50, %v59
    %v61 = vmul.f32 %v52, %v59
    %v62 = vsub.f32 %v45, %v60
    %v63 = vsub.f32 %v46, %v61
    %v64 = vmul.f32 %v62, %v62
    %v65 = vmul.f32 %v63, %v63
    %66 = vadd.xlane.f32.xlu0 %v64
    %v67 = vpop.xlane.xlu0 %66
    %68 = vadd.xlane.f32.xlu0 %v65
    %v69 = vpop.xlane.xlu0 %68
    %v70 = vmul.f32 %v67, 0.007874016
    %v71 = vmul.f32 %v69, 0.007874016
    %v72 = vrsqrt.pop %v70
    %v73 = vmul.f32 %v72, %v70
    %v74 = vmul.f32 %v73, %v72
    %v75 = vmul.f32 0.5, %v74
    %v76 = vsub.f32 1.5, %v75
    %v77 = vmul.f32 %v72, %v76
    %v78 = vmul.f32 %v70, %v77
    %vm79 = vcmp.eq.f32.partialorder %v70, inf
    %v80 = vsel %vm79, %v70, %v78
    %vm81 = vcmp.eq.f32.partialorder %v70, 0.0
    %v82 = vand.u32 %v70, 2147483648
    %v83 = vsel %vm81, %v82, %v80
    %v84 = vrsqrt.pop %v71
    %v85 = vmul.f32 %v84, %v71
    %v86 = vmul.f32 %v85, %v84
    %v87 = vmul.f32 0.5, %v86
    %v88 = vsub.f32 1.5, %v87
    %v89 = vmul.f32 %v84, %v88
    %v90 = vmul.f32 %v71, %v89
    %vm91 = vcmp.eq.f32.partialorder %v71, inf
    %v92 = vsel %vm91, %v71, %v90
    %vm93 = vcmp.eq.f32.partialorder %v71, 0.0
    %v94 = vand.u32 %v71, 2147483648
    %v95 = vsel %vm93, %v94, %v92
    %v96 = vadd.f32 %v83, 1e-12
    %v97 = vadd.f32 %v95, 1e-12
    %v98 = vrcp.pop %v96
    %v99 = vmul.f32 %v96, %v98
    %v100 = vsub.f32 1.0, %v99
    %v101 = vmul.f32 %v98, %v100
    %v102 = vadd.f32 %v98, %v101
    %vm103 = vweird.f32 %v96
    %vm104 = vweird.f32 %v98
    %vm105 = vmor %vm103, %vm104
    %v106 = vsel %vm105, %v98, %v102
    %v107 = vand.u32 2147483647, %v96
    %vm108 = vcmp.eq.f32.partialorder %v107, 8.507059e+37
    %v109 = vand.u32 %v96, 2147483648
    %v110 = vor.u32 1.1754944e-38, %v109
    %v111 = vsel %vm108, %v110, %v106
    %v112 = vmul.f32 1.0, %v111
    %v113 = vrcp.pop %v97
    %v114 = vmul.f32 %v97, %v113
    %v115 = vsub.f32 1.0, %v114
    %v116 = vmul.f32 %v113, %v115
    %v117 = vadd.f32 %v113, %v116
    %vm118 = vweird.f32 %v97
    %vm119 = vweird.f32 %v113
    %vm120 = vmor %vm118, %vm119
    %v121 = vsel %vm120, %v113, %v117
    %v122 = vand.u32 2147483647, %v97
    %vm123 = vcmp.eq.f32.partialorder %v122, 8.507059e+37
    %v124 = vand.u32 %v97, 2147483648
    %v125 = vor.u32 1.1754944e-38, %v124
    %v126 = vsel %vm123, %v125, %v121
    %v127 = vmul.f32 1.0, %v126
    %v128 = vmul.f32 %v62, %v112
    %v129 = vmul.f32 %v63, %v127
    %v131 = vperm.slane %v47, 0
    %v133 = vmul.f32 %v131, %v128
    %v134 = vmul.f32 %v131, %v129
    %v136 = vperm.slane %v48, 0
    %v138 = vadd.f32 %v133, %v136
    %v139 = vadd.f32 %v134, %v136
    %140 = vst [vmem:[#allocation7] sm:$0xff] %v138
    %141 = vst [vmem:[#allocation7 + $0x8] sm:$0xff] %v139
    // Predicated region
    $region22: #{tpu_custom_call.1} parent=1 // pred_check
      _
    $region23: #{tpu_custom_call.1} parent=1 // pred_check_branch
      %143 = sbr.rel (0) target = $region25
    $region24: #{tpu_custom_call.1} parent=1 // pred_region
      %145 = vsyncadd [#allocation4], 0
      %s146 = sshll.u32 [#allocation7], 4
      %s147 = int_to_ptr.vmem [resolvable:$true] %s146
      %s148 = sshll.u32 %s3, 4
      %s149 = int_to_ptr.hbm [resolvable:$true] %s148
      %154 = dma.vmem_to_hbm [thread:$0]  %s147, 256, %s149, [#allocation4], 128, 128, 8
    $region25: #{tpu_custom_call.1} parent=1 // pred_fallthru
      _
    // Predicated region
    $region26: #{tpu_custom_call.1} parent=1 // pred_check
      _
    $region27: #{tpu_custom_call.1} parent=1 // pred_check_branch
      %156 = sbr.rel (0) target = $region29
    $region28: #{tpu_custom_call.1} parent=1 // pred_region
      %158 = dma.done [#allocation4], 256
    $region29: #{tpu_custom_call.1} parent=1 // pred_fallthru
      _
    %159 = vsyncpa [#allocation3], 1
    %160 = vsyncpa [#allocation6], 1
    %161 = vsyncpa [#allocation4], 1

</llo_original>
